<compile_context>
chip_gen: v7x
topology: tpu7x:2x2x1
jax: 0.10.0
libtpu: 0.0.40
codegen_flags: <defaults>
</compile_context>

<pallas_src>
import functools
import math

import jax
import jax.numpy as jnp
from jax.experimental import pallas as pl
from jax.experimental.pallas import tpu as pltpu

_MIB = 1024 * 1024


def _rmsnorm_kernel(x_ref, w_ref, o_ref, *, eps, inv_d, x_dtype):
    # Matches PyTorch exactly:
    #   normed = (x.float() * rsqrt(mean(x^2, -1) + eps)).type_as(x)
    #   out    = normed * weight   (promotes to the result dtype)
    # Padded feature lanes hold zeros (contribute nothing to the sum); the
    # mean uses the true D via inv_d.  Padded tail rows of a ragged last M
    # tile may compute garbage/NaN, which is harmless: the reduction is
    # per-row and out-of-range writes are dropped by Pallas.
    x = x_ref[...].astype(jnp.float32)                      # [tm, D_pad] f32
    ms = jnp.sum(x * x, axis=-1, keepdims=True) * inv_d     # mean over true D (XLU)
    inv = jax.lax.rsqrt(ms + eps)                           # EUP slot
    normed = (x * inv).astype(x_dtype)                      # .type_as(x)
    o_ref[...] = (normed * w_ref[...]).astype(o_ref.dtype)  # * weight


def _round_up(x, m):
    return ((x + m - 1) // m) * m


def _tpu_params():
    """(per-core VMEM capacity bytes, TensorCores per chip), safe fallbacks."""
    cap = 128 * _MIB
    try:
        cap = int(getattr(pltpu.get_tpu_info(), "vmem_capacity_bytes", cap)) or cap
    except Exception:
        pass
    n_tc = 1
    try:
        if "v7" in jax.devices()[0].device_kind.lower():
            n_tc = 2
    except Exception:
        pass
    # 64 MiB-per-core parts (v7x-class) have two TensorCores per chip.
    if cap <= 96 * _MIB:
        n_tc = max(n_tc, 2)
    return cap, n_tc


def _vmem_budget(cap):
    """(working budget for picking tm, cap for vmem_limit_bytes)."""
    if cap <= 96 * _MIB:           # v7x-class: 64 MiB per core
        return 30 * _MIB, 44 * _MIB
    return 48 * _MIB, 64 * _MIB    # v5e / v6e: 128 MiB per core


def _pick_tm(M, D_pad, dsize, osize, budget, n_tc):
    # Sublane multiple driven by the narrowest tiled dtype (8 f32, 16 bf16).
    sub = {4: 8, 2: 16, 1: 32}.get(min(dsize, osize), 8)
    # Per-row VMEM: double-buffered input + output blocks plus the f32
    # working set (upcast + normed intermediate).
    per_row = D_pad * (2 * dsize + 2 * osize + 2 * 4)
    tm = (budget // max(per_row, 1)) // sub * sub
    tm = max(sub, min(tm, 4096))
    m_pad = _round_up(M, sub)
    tm = min(tm, m_pad)
    if n_tc >= 2 and m_pad > sub:
        # Multi-TensorCore part: aim for >= 4 grid steps per core so each
        # core still software-pipelines its DMAs, but don't shrink tiles
        # below ~256 rows (the tile-size curve is flat past that).
        tm_floor = min(tm, max(sub, 256))
        tm_target = max(tm_floor, _round_up(pl.cdiv(M, 4 * n_tc), sub))
        tm = min(tm, tm_target)
        grid = pl.cdiv(M, tm)
        if grid > 1 and grid % 2 == 1:
            # Prefer an even program count so the two cores stay balanced.
            tm_even = _round_up(pl.cdiv(M, grid + 1), sub)
            if tm_even >= sub and pl.cdiv(M, tm_even) % 2 == 0:
                tm = tm_even
    return tm


def rmsnorm_pallas(x, weight, *, eps=1e-5, tm=None):
    """x: [..., D], weight: [D] -> [..., D]  (PyTorch RMSNorm forward)."""
    orig_shape = x.shape
    D = orig_shape[-1]
    M = max(1, math.prod(orig_shape[:-1]))

    # Output dtype follows PyTorch promotion of `normed(type_as x) * weight`.
    out_dtype = jnp.promote_types(x.dtype, weight.dtype)

    # Pad the feature axis to a lane multiple so stores are lane-dense
    # (unmasked vst); padded lanes are zero so the sum of squares is exact.
    D_pad = _round_up(D, 128)
    x2d = x.reshape(M, D)
    w1d = weight.astype(out_dtype)
    if D_pad != D:
        x2d = jnp.pad(x2d, ((0, 0), (0, D_pad - D)))
        w1d = jnp.pad(w1d, ((0, D_pad - D),))
    w2d = w1d.reshape(1, D_pad)

    dsize = jnp.dtype(x.dtype).itemsize
    osize = jnp.dtype(out_dtype).itemsize
    cap, n_tc = _tpu_params()
    budget, vmem_cap = _vmem_budget(cap)
    if tm is None:
        tm = _pick_tm(M, D_pad, dsize, osize, budget, n_tc)
    grid = (pl.cdiv(M, tm),)

    # Scoped-VMEM limit from the real footprint: double-buffered in/out
    # blocks, f32 working set (upcast + normed), plus the resident weight.
    tile_bytes = tm * D_pad * (2 * dsize + 2 * osize + 2 * 4) + 2 * D_pad * osize
    vmem_limit = int(min(max(int(1.25 * tile_bytes), 4 * _MIB), vmem_cap))

    cost = pl.CostEstimate(
        flops=4 * M * D_pad,
        transcendentals=M,
        bytes_accessed=M * D_pad * (dsize + osize) + D_pad * osize,
    )

    # TODO(synk): if a profile shows exposed input DMA at the chosen tm, try
    # pipeline_mode=pl.Buffered(3) on the activation in_spec (extra buffer
    # trades directly against tile size, especially on 64 MiB v7x VMEM).
    out2d = pl.pallas_call(
        functools.partial(
            _rmsnorm_kernel,
            eps=float(eps),
            inv_d=1.0 / float(D),
            x_dtype=jnp.dtype(x.dtype),
        ),
        out_shape=jax.ShapeDtypeStruct((M, D_pad), out_dtype),
        grid_spec=pl.GridSpec(
            grid=grid,
            in_specs=[
                pl.BlockSpec((tm, D_pad), lambda i: (i, 0)),   # activations (M-tiled)
                pl.BlockSpec((1, D_pad), lambda i: (0, 0)),    # grid-invariant weight
            ],
            out_specs=pl.BlockSpec((tm, D_pad), lambda i: (i, 0)),
        ),
        compiler_params=pltpu.CompilerParams(
            dimension_semantics=("parallel",),
            vmem_limit_bytes=vmem_limit,
        ),
        cost_estimate=cost,
    )(x2d, w2d)

    if D_pad != D:
        out2d = out2d[:, :D]
    return out2d.reshape(orig_shape).astype(out_dtype)


if __name__ == "__main__":
    # Small shapes consistent with the module: batch=2, seq=8, dim=256.
    B, T, D = 2, 8, 256
    eps = 1e-5

    key = jax.random.PRNGKey(0)
    kx, kw, kx2, kw2 = jax.random.split(key, 4)

    def ref_rmsnorm(x, w, eps):
        # Pure-JAX reference mirroring the PyTorch forward.
        xf = x.astype(jnp.float32)
        n = xf * jax.lax.rsqrt(jnp.mean(xf * xf, axis=-1, keepdims=True) + eps)
        return n.astype(x.dtype) * w

    # 1) f32 activations, f32 weight (lane-dense D, multiple of 128).
    x = jax.random.normal(kx, (B, T, D), dtype=jnp.float32)
    weight = 1.0 + 0.1 * jax.random.normal(kw, (D,), dtype=jnp.float32)
    out = rmsnorm_pallas(x, weight, eps=eps)
    jax.block_until_ready(out)
    ref = ref_rmsnorm(x, weight, eps)
    assert out.shape == (B, T, D) and out.dtype == ref.dtype
    assert jnp.allclose(out, ref, atol=1e-5, rtol=1e-5)

    # 2) bf16 activations, f32 weight (exercises the PyTorch dtype promotion).
    xb = x.astype(jnp.bfloat16)
    outb = rmsnorm_pallas(xb, weight, eps=eps)
    jax.block_until_ready(outb)
    refb = ref_rmsnorm(xb, weight, eps)
    assert outb.dtype == refb.dtype == jnp.float32
    assert jnp.allclose(outb, refb, atol=2e-2, rtol=2e-2)

    # 3) D not a multiple of 128 (exercises the lane-padding path).
    Dn = 192
    x3 = jax.random.normal(kx2, (B, T, Dn), dtype=jnp.float32)
    w3 = 1.0 + 0.1 * jax.random.normal(kw2, (Dn,), dtype=jnp.float32)
    out3 = rmsnorm_pallas(x3, w3, eps=eps)
    jax.block_until_ready(out3)
    ref3 = ref_rmsnorm(x3, w3, eps)
    assert out3.shape == (B, T, Dn)
    assert jnp.allclose(out3, ref3, atol=1e-5, rtol=1e-5)

    print("KERNEL_OK")
</pallas_src>

<mosaic_0001>
module attributes {stable_mosaic.version = 11 : i64} {
  func.func @_rmsnorm_kernel(%arg0: i32, %arg1: memref<16x256xf32, #tpu.memory_space<vmem>>, %arg2: memref<1x256xf32, #tpu.memory_space<vmem>>, %arg3: memref<16x256xf32, #tpu.memory_space<vmem>>) attributes {dimension_semantics = [#tpu.dimension_semantics<parallel>], iteration_bounds = array<i64: 1>, scalar_prefetch = 0 : i64, scratch_operands = 0 : i64, tpu.core_type = #tpu.core_type<tc>, window_params = [{transform_indices = @transform_0, window_bounds = array<i64: 16, 256>}, {pipeline_mode = #tpu.pipeline_mode<synchronous>, transform_indices = @transform_1, window_bounds = array<i64: 1, 256>}, {transform_indices = @transform_2, window_bounds = array<i64: 16, 256>}]} {
    %c0 = arith.constant 0 : index
    %c0_0 = arith.constant 0 : index
    %0 = vector.load %arg1[%c0, %c0_0] : memref<16x256xf32, #tpu.memory_space<vmem>>, vector<16x256xf32>
    %1 = arith.mulf %0, %0 : vector<16x256xf32>
    %cst = arith.constant dense<0.000000e+00> : vector<16xf32>
    %2 = vector.multi_reduction <add>, %1, %cst [1] : vector<16x256xf32> to vector<16xf32>
    %3 = vector.shape_cast %2 : vector<16xf32> to vector<16x1xf32>
    %cst_1 = arith.constant 3.906250e-03 : f32
    %4 = vector.broadcast %cst_1 : f32 to vector<16x1xf32>
    %5 = arith.mulf %3, %4 : vector<16x1xf32>
    %cst_2 = arith.constant 9.99999974E-6 : f32
    %6 = vector.broadcast %cst_2 : f32 to vector<16x1xf32>
    %7 = arith.addf %5, %6 : vector<16x1xf32>
    %8 = math.rsqrt %7 : vector<16x1xf32>
    %9 = vector.broadcast %8 : vector<16x1xf32> to vector<16x256xf32>
    %10 = arith.mulf %0, %9 : vector<16x256xf32>
    %c0_3 = arith.constant 0 : index
    %c0_4 = arith.constant 0 : index
    %11 = vector.load %arg2[%c0_3, %c0_4] : memref<1x256xf32, #tpu.memory_space<vmem>>, vector<1x256xf32>
    %12 = vector.broadcast %11 : vector<1x256xf32> to vector<16x256xf32>
    %13 = arith.mulf %10, %12 : vector<16x256xf32>
    %c0_5 = arith.constant 0 : index
    %c0_6 = arith.constant 0 : index
    %14 = vector.load %arg3[%c0_5, %c0_6] : memref<16x256xf32, #tpu.memory_space<vmem>>, vector<16x256xf32>
    tpu.vector_store %arg3[%c0_5, %c0_6], %13 {strides = array<i32>} : memref<16x256xf32, #tpu.memory_space<vmem>>, vector<16x256xf32>,
    return
  }
  func.func @transform_0(%arg0: i32) -> (i32, i32) {
    %c0_i32 = arith.constant 0 : i32
    %c0_i32_0 = arith.constant 0 : i32
    return %arg0, %c0_i32 : i32, i32
  }
  func.func @transform_1(%arg0: i32) -> (i32, i32) {
    %c0_i32 = arith.constant 0 : i32
    %c0_i32_0 = arith.constant 0 : i32
    %c0_i32_1 = arith.constant 0 : i32
    return %c0_i32, %c0_i32_0 : i32, i32
  }
  func.func @transform_2(%arg0: i32) -> (i32, i32) {
    %c0_i32 = arith.constant 0 : i32
    %c0_i32_0 = arith.constant 0 : i32
    return %arg0, %c0_i32 : i32, i32
  }
}

</mosaic_0001>

<llo_original>
// kernel: tpu_custom_call.1
$region0: #{tpu_custom_call.1}
  #allocation0 [shape = 'u32[]', space=smem, size = 0x4, offset = 0x4, fixed_abs, tag = 'smem constant byte address 0x4 - core index']
  #allocation1 [shape = 'u32[144,128]{1,0:T(1,128)}', space=vmem, size = 0x12000, scoped, tag = 'internal scratch']
  %s0 = inlined_call_operand.hbm [shape: f32[16,256], index: 0, kind: input, shape index: {}]
  %s1 = inlined_call_operand.vmem [shape: f32[1,256], index: 1, kind: input, shape index: {}]
  %s2 = inlined_call_operand.hbm [shape: f32[16,256], index: 2, kind: output, shape index: {}]
  %s3 = sld [smem:[#allocation0]]
  $region22: #{tpu_custom_call.1} parent=0
    _
  %s5 = ssub.s32 1, %s3
  %s6 = scalar_select 0, %s5, %s3
  $region1: #{tpu_custom_call.1} parent=0
    #allocation2 [shape = 'u8[16384]{0}', space=vmem, size = 0x4000, scoped, tag = 'input window, operand 0, single buffered']
    #allocation3 [shape = 's32[1]{0}', space=sflag, size = 0x4, scoped, tag = 'scoped memory for tpu_custom_call.1']
    #allocation4 [shape = 's32[1]{0}', space=sflag, size = 0x4, scoped, tag = 'scoped memory for tpu_custom_call.1']
    #allocation5 [shape = 'u8[16384]{0}', space=vmem, size = 0x4000, scoped, tag = 'output window, operand 0, single buffered']
    %7 = vsyncpa [#allocation3], 0
    %8 = vsyncpa [#allocation4], 0
    // Predicated region
    $region2: #{tpu_custom_call.1} parent=1 // pred_check
      _
    $region3: #{tpu_custom_call.1} parent=1 // pred_check_branch
      %10 = sbr.rel (0) target = $region5
    $region4: #{tpu_custom_call.1} parent=1 // pred_region
      %s12 = ssub.s32 512, 512
      %13 = vsyncadd [#allocation3], %s12
      %s14 = sshll.u32 [#allocation2], 4
      %s15 = int_to_ptr.vmem [resolvable:$true] %s14
      %20 = dma.hbm_to_vmem [thread:$0]  %s0, 512, %s15, [#allocation3], 256, 256, 16
    $region5: #{tpu_custom_call.1} parent=1 // pred_fallthru
      _
    // Predicated region
    $region6: #{tpu_custom_call.1} parent=1 // pred_check
      _
    $region7: #{tpu_custom_call.1} parent=1 // pred_check_branch
      %22 = sbr.rel (0) target = $region9
    $region8: #{tpu_custom_call.1} parent=1 // pred_region
      _
    $region9: #{tpu_custom_call.1} parent=1 // pred_fallthru
      _
    // Predicated region
    $region10: #{tpu_custom_call.1} parent=1 // pred_check
      _
    $region11: #{tpu_custom_call.1} parent=1 // pred_check_branch
      %24 = sbr.rel (0) target = $region13
    $region12: #{tpu_custom_call.1} parent=1 // pred_region
      %25 = dma.done [#allocation3], 512
    $region13: #{tpu_custom_call.1} parent=1 // pred_fallthru
      _
    %v26 = vld [vmem:[#allocation2] sm:$0xff]
    %v27 = vld [vmem:[#allocation2 + $0x8] sm:$0xff]
    %v28 = vld [vmem:[#allocation2 + $0x10] sm:$0xff]
    %v29 = vld [vmem:[#allocation2 + $0x18] sm:$0xff]
    %v30 = vmul.f32 %v26, %v26
    %v31 = vmul.f32 %v27, %v27
    %v32 = vmul.f32 %v28, %v28
    %v33 = vmul.f32 %v29, %v29
    %v34 = vadd.f32 %v30, %v31
    %35 = vadd.xlane.f32.xlu0 %v34
    %v36 = vpop.xlane.xlu0 %35
    %v37 = vadd.f32 %v32, %v33
    %38 = vadd.xlane.f32.xlu0 %v37
    %v39 = vpop.xlane.xlu0 %38
    %v40 = vmul.f32 %v36, 0.00390625
    %v41 = vmul.f32 %v39, 0.00390625
    %v42 = vadd.f32 %v40, 1e-05
    %v43 = vadd.f32 %v41, 1e-05
    %v44 = vrsqrt.pop %v42
    %v45 = vrsqrt.pop %v43
    %v46 = vmul.f32 %v26, %v44
    %v47 = vmul.f32 %v27, %v44
    %v48 = vmul.f32 %v28, %v45
    %v49 = vmul.f32 %v29, %v45
    %v50 = vld [vmem:[%s1] sm:$0x3]
    %v52 = vlaneseq
    %v53 = vshrl.u32 %v52, 7
    %v54 = vsub.s32 0, %v53
    %v55 = vrot.slane %v50, %v54
    %v56 = vlaneseq
    %v57 = vshrl.u32 %v56, 7
    %v58 = vsub.s32 1, %v57
    %v59 = vrot.slane %v50, %v58
    %v62 = vmul.f32 %v46, %v55
    %v63 = vmul.f32 %v47, %v59
    %v64 = vmul.f32 %v48, %v55
    %v65 = vmul.f32 %v49, %v59
    %66 = vst [vmem:[#allocation5] sm:$0xff] %v62
    %67 = vst [vmem:[#allocation5 + $0x8] sm:$0xff] %v63
    %68 = vst [vmem:[#allocation5 + $0x10] sm:$0xff] %v64
    %69 = vst [vmem:[#allocation5 + $0x18] sm:$0xff] %v65
    // Predicated region
    $region14: #{tpu_custom_call.1} parent=1 // pred_check
      _
    $region15: #{tpu_custom_call.1} parent=1 // pred_check_branch
      %71 = sbr.rel (0) target = $region17
    $region16: #{tpu_custom_call.1} parent=1 // pred_region
      %s73 = ssub.s32 512, 512
      %74 = vsyncadd [#allocation4], %s73
      %s75 = sshll.u32 [#allocation5], 4
      %s76 = int_to_ptr.vmem [resolvable:$true] %s75
      %81 = dma.vmem_to_hbm [thread:$0]  %s76, 512, %s2, [#allocation4], 256, 256, 16
    $region17: #{tpu_custom_call.1} parent=1 // pred_fallthru
      _
    // Predicated region
    $region18: #{tpu_custom_call.1} parent=1 // pred_check
      _
    $region19: #{tpu_custom_call.1} parent=1 // pred_check_branch
      %83 = sbr.rel (0) target = $region21
    $region20: #{tpu_custom_call.1} parent=1 // pred_region
      %84 = dma.done [#allocation4], 512
    $region21: #{tpu_custom_call.1} parent=1 // pred_fallthru
      _
    %85 = vsyncpa [#allocation3], 1
    %86 = vsyncpa [#allocation4], 1

</llo_original>
